<compile_context>
chip_gen: v6e
topology: v6e:2x2x1
jax: 0.10.0
libtpu: 0.0.40
codegen_flags: <defaults>
</compile_context>

<pallas_src>
import math
from functools import partial

import jax
import jax.numpy as jnp
from jax import lax
from jax.experimental import pallas as pl
from jax.experimental.pallas import tpu as pltpu


def _outconv_kernel(p_ref, w_ref, b_ref, o_ref):
    # p_ref : (K, N*L)    im2col patches, batch lane-concatenated along L
    # w_ref : (Cout, K)   fused conv_1(conv_3) weights
    # b_ref : (Cout, 1)   fused bias
    # o_ref : (Cout, N*L) lane-dense output (512 lanes here -> unmasked vst)
    o_ref[...] = (jnp.dot(w_ref[...], p_ref[...],
                          preferred_element_type=jnp.float32)
                  + b_ref[...]).astype(o_ref.dtype)


@partial(jax.jit, static_argnames=("k",))
def outconv_forward(x, w3, b3, w1, b1, *, k):
    """x: (N, Cin, H, W); w3: (Cmid, Cin, k, k); b3: (Cmid,);
    w1: (Cout, Cmid, 1, 1); b1: (Cout,).  Returns (N, Cout, Ho, Wo) matching
    PyTorch Conv2d(padding=k//2) semantics (Ho=H, Wo=W for odd k)."""
    N, Cin, H, W = x.shape
    Cout = w1.shape[0]
    p = k // 2
    Ho = H + 2 * p - k + 1
    Wo = W + 2 * p - k + 1
    L = Ho * Wo
    NL = N * L
    K = k * k * Cin

    # --- Algebraic fusion of the two convs (exact: no activation between). ---
    w1m = w1[:, :, 0, 0]                                  # (Cout, Cmid)
    w_eff = jnp.einsum('om,mikl->oikl', w1m, w3)          # (Cout, Cin, k, k)
    b_eff = w1m @ b3 + b1                                 # (Cout,)

    # Tap-major flattening (kh, kw, cin) to match the im2col row ordering.
    w_flat = jnp.transpose(w_eff, (0, 2, 3, 1)).reshape(Cout, K)
    b_col = b_eff.reshape(Cout, 1)

    # --- im2col with batch lane-concatenated; all of this fuses under jit. ---
    xp = jnp.pad(x, ((0, 0), (0, 0), (p, p), (p, p)))     # (N, Cin, Hp, Wp)
    rows = []
    for kh in range(k):
        for kw in range(k):
            tap = xp[:, :, kh:kh + Ho, kw:kw + Wo]        # (N, Cin, Ho, Wo)
            rows.append(jnp.transpose(tap, (1, 0, 2, 3)).reshape(Cin, NL))
    patches = jnp.concatenate(rows, axis=0)               # (K, N*L)

    cost = pl.CostEstimate(
        flops=2 * Cout * K * NL,
        transcendentals=0,
        bytes_accessed=4 * (K * NL + Cout * K + Cout + Cout * NL))

    out_flat = pl.pallas_call(
        _outconv_kernel,
        out_shape=jax.ShapeDtypeStruct((Cout, NL), x.dtype),
        grid=(1,),                                        # single step
        in_specs=[
            pl.BlockSpec((K, NL), lambda i: (0, 0)),
            pl.BlockSpec((Cout, K), lambda i: (0, 0)),
            pl.BlockSpec((Cout, 1), lambda i: (0, 0)),
        ],
        out_specs=pl.BlockSpec((Cout, NL), lambda i: (0, 0)),
        compiler_params=pltpu.CompilerParams(
            dimension_semantics=("arbitrary",)),
        cost_estimate=cost,
    )(patches, w_flat, b_col)

    # (Cout, N*L) -> (N, Cout, Ho, Wo): tiny leading-dim split/swap, fused.
    return jnp.transpose(out_flat.reshape(Cout, N, Ho, Wo), (1, 0, 2, 3))


def _reference(x, w3, b3, w1, b1, *, k):
    p = k // 2
    mid = lax.conv_general_dilated(
        x, w3, window_strides=(1, 1), padding=((p, p), (p, p)),
        dimension_numbers=("NCHW", "OIHW", "NCHW"))
    mid = mid + b3.reshape(1, -1, 1, 1)
    out = lax.conv_general_dilated(
        mid, w1, window_strides=(1, 1), padding=((0, 0), (0, 0)),
        dimension_numbers=("NCHW", "OIHW", "NCHW"))
    return out + b1.reshape(1, -1, 1, 1)


if __name__ == "__main__":
    # Module config: OutConv(in_channels=4, out_channels=3, k_size=3)
    N, Cin, H, W = 2, 4, 16, 16
    k = 3
    Cmid = Cin // 2          # int(in_channels / 2)
    Cout = 3

    key = jax.random.PRNGKey(0)
    kx, kw3, kb3, kw1, kb1 = jax.random.split(key, 5)

    x = jax.random.normal(kx, (N, Cin, H, W), dtype=jnp.float32)

    # Deterministic param init (PyTorch Conv2d-style uniform bounds).
    bound3 = 1.0 / math.sqrt(Cin * k * k)
    w3 = jax.random.uniform(kw3, (Cmid, Cin, k, k), jnp.float32, -bound3, bound3)
    b3 = jax.random.uniform(kb3, (Cmid,), jnp.float32, -bound3, bound3)
    bound1 = 1.0 / math.sqrt(Cmid * 1 * 1)
    w1 = jax.random.uniform(kw1, (Cout, Cmid, 1, 1), jnp.float32, -bound1, bound1)
    b1 = jax.random.uniform(kb1, (Cout,), jnp.float32, -bound1, bound1)

    out = outconv_forward(x, w3, b3, w1, b1, k=k)
    out = jax.block_until_ready(out)

    ref = jax.block_until_ready(_reference(x, w3, b3, w1, b1, k=k))
    assert out.shape == ref.shape == (N, Cout, H, W)
    assert jnp.allclose(out, ref, atol=1e-4, rtol=1e-4)

    print("KERNEL_OK")
</pallas_src>

<mosaic_0001>
module attributes {stable_mosaic.version = 11 : i64} {
  func.func @_outconv_kernel(%arg0: i32, %arg1: memref<36x512xf32, #tpu.memory_space<vmem>>, %arg2: memref<3x36xf32, #tpu.memory_space<vmem>>, %arg3: memref<3x1xf32, #tpu.memory_space<vmem>>, %arg4: memref<3x512xf32, #tpu.memory_space<vmem>>) attributes {dimension_semantics = [#tpu.dimension_semantics<arbitrary>], iteration_bounds = array<i64: 1>, scalar_prefetch = 0 : i64, scratch_operands = 0 : i64, tpu.core_type = #tpu.core_type<tc>, window_params = [{pipeline_mode = #tpu.pipeline_mode<synchronous>, transform_indices = @transform_0, window_bounds = array<i64: 36, 512>}, {pipeline_mode = #tpu.pipeline_mode<synchronous>, transform_indices = @transform_1, window_bounds = array<i64: 3, 36>}, {pipeline_mode = #tpu.pipeline_mode<synchronous>, transform_indices = @transform_2, window_bounds = array<i64: 3, 1>}, {pipeline_mode = #tpu.pipeline_mode<synchronous>, transform_indices = @transform_3, window_bounds = array<i64: 3, 512>}]} {
    %c0 = arith.constant 0 : index
    %c0_0 = arith.constant 0 : index
    %0 = vector.load %arg2[%c0, %c0_0] : memref<3x36xf32, #tpu.memory_space<vmem>>, vector<3x36xf32>
    %c0_1 = arith.constant 0 : index
    %c0_2 = arith.constant 0 : index
    %1 = vector.load %arg1[%c0_1, %c0_2] : memref<36x512xf32, #tpu.memory_space<vmem>>, vector<36x512xf32>
    %cst = arith.constant dense<0.000000e+00> : vector<3x512xf32>
    %2 = tpu.matmul %0, %1, %cst {dimension_numbers = #tpu.dot_dimension_numbers<[1], [0], [0], [1], [0, 0, 1, 1], [], []>} : vector<3x36xf32>, vector<36x512xf32>, vector<3x512xf32> -> vector<3x512xf32>
    %c0_3 = arith.constant 0 : index
    %c0_4 = arith.constant 0 : index
    %3 = vector.load %arg3[%c0_3, %c0_4] : memref<3x1xf32, #tpu.memory_space<vmem>>, vector<3x1xf32>
    %4 = vector.broadcast %3 : vector<3x1xf32> to vector<3x512xf32>
    %5 = arith.addf %2, %4 : vector<3x512xf32>
    %c0_5 = arith.constant 0 : index
    %c0_6 = arith.constant 0 : index
    %6 = vector.load %arg4[%c0_5, %c0_6] : memref<3x512xf32, #tpu.memory_space<vmem>>, vector<3x512xf32>
    tpu.vector_store %arg4[%c0_5, %c0_6], %5 {strides = array<i32>} : memref<3x512xf32, #tpu.memory_space<vmem>>, vector<3x512xf32>,
    return
  }
  func.func @transform_0(%arg0: i32) -> (i32, i32) {
    %c0_i32 = arith.constant 0 : i32
    %c0_i32_0 = arith.constant 0 : i32
    %c0_i32_1 = arith.constant 0 : i32
    return %c0_i32, %c0_i32_0 : i32, i32
  }
  func.func @transform_1(%arg0: i32) -> (i32, i32) {
    %c0_i32 = arith.constant 0 : i32
    %c0_i32_0 = arith.constant 0 : i32
    %c0_i32_1 = arith.constant 0 : i32
    return %c0_i32, %c0_i32_0 : i32, i32
  }
  func.func @transform_2(%arg0: i32) -> (i32, i32) {
    %c0_i32 = arith.constant 0 : i32
    %c0_i32_0 = arith.constant 0 : i32
    %c0_i32_1 = arith.constant 0 : i32
    return %c0_i32, %c0_i32_0 : i32, i32
  }
  func.func @transform_3(%arg0: i32) -> (i32, i32) {
    %c0_i32 = arith.constant 0 : i32
    %c0_i32_0 = arith.constant 0 : i32
    %c0_i32_1 = arith.constant 0 : i32
    return %c0_i32, %c0_i32_0 : i32, i32
  }
}

</mosaic_0001>

<llo_original>
// kernel: outconv_forward.1
$region0: #{outconv_forward.1}
  #allocation0 [shape = 'u32[]', space=smem, size = 0x4, offset = 0x4, fixed_abs, tag = 'smem constant byte address 0x4 - core index']
  #allocation1 [shape = 'u32[144,128]{1,0:T(1,128)}', space=vmem, size = 0x12000, scoped, tag = 'internal scratch']
  %s0 = inlined_call_operand.vmem [shape: f32[36,512], index: 0, kind: input, shape index: {}]
  %s1 = inlined_call_operand.vmem [shape: f32[3,36], index: 1, kind: input, shape index: {}]
  %s2 = inlined_call_operand.vmem [shape: f32[3,1], index: 2, kind: input, shape index: {}]
  %s3 = inlined_call_operand.vmem [shape: f32[3,512], index: 3, kind: output, shape index: {}]
  %s4 = sld [smem:[#allocation0]]
  $region22: #{outconv_forward.1} parent=0
    _
  %s6 = ssub.s32 1, %s4
  %s7 = scalar_select 0, %s6, %s4
  // Predicated region
  $region2: #{outconv_forward.1} parent=0 // pred_check
    _
  $region3: #{outconv_forward.1} parent=0 // pred_check_branch
    %9 = sbr.rel (0) target = $region5
  $region4: #{outconv_forward.1} parent=0 // pred_region
    _
  $region5: #{outconv_forward.1} parent=0 // pred_fallthru
    _
  // Predicated region
  $region6: #{outconv_forward.1} parent=0 // pred_check
    _
  $region7: #{outconv_forward.1} parent=0 // pred_check_branch
    %11 = sbr.rel (0) target = $region9
  $region8: #{outconv_forward.1} parent=0 // pred_region
    _
  $region9: #{outconv_forward.1} parent=0 // pred_fallthru
    _
  // Predicated region
  $region10: #{outconv_forward.1} parent=0 // pred_check
    _
  $region11: #{outconv_forward.1} parent=0 // pred_check_branch
    %13 = sbr.rel (0) target = $region13
  $region12: #{outconv_forward.1} parent=0 // pred_region
    _
  $region13: #{outconv_forward.1} parent=0 // pred_fallthru
    _
  %v14 = vld [vmem:[%s1] sm:$0x7]
  %v15 = vld [vmem:[%s0] sm:$0xff]
  %v16 = vld [vmem:[%s0 + $0x8] sm:$0xff]
  %v17 = vld [vmem:[%s0 + $0x10] sm:$0xff]
  %v18 = vld [vmem:[%s0 + $0x18] sm:$0xff]
  %v19 = vld [vmem:[%s0 + $0x20] sm:$0xff]
  %v20 = vld [vmem:[%s0 + $0x28] sm:$0xff]
  %v21 = vld [vmem:[%s0 + $0x30] sm:$0xff]
  %v22 = vld [vmem:[%s0 + $0x38] sm:$0xff]
  %v23 = vld [vmem:[%s0 + $0x40] sm:$0xff]
  %v24 = vld [vmem:[%s0 + $0x48] sm:$0xff]
  %v25 = vld [vmem:[%s0 + $0x50] sm:$0xff]
  %v26 = vld [vmem:[%s0 + $0x58] sm:$0xff]
  %v27 = vld [vmem:[%s0 + $0x60] sm:$0xff]
  %v28 = vld [vmem:[%s0 + $0x68] sm:$0xff]
  %v29 = vld [vmem:[%s0 + $0x70] sm:$0xff]
  %v30 = vld [vmem:[%s0 + $0x78] sm:$0xff]
  %v31 = vld [vmem:[%s0 + $0x80] sm:$0xf]
  %v32 = vld [vmem:[%s0 + $0x88] sm:$0xf]
  %v33 = vld [vmem:[%s0 + $0x90] sm:$0xf]
  %v34 = vld [vmem:[%s0 + $0x98] sm:$0xf]
  %v35 = vld [vmem:[%s2] sm:$0x7]
  %37 = vset.pattern.permute.xlu0 0
  %38 = vperm.xlu0 %37, %v35
  %v39 = vpop.permute.xlu0 %38
  %vm41 = vcmask 293888
  %v43 = vsel %vm41, %v14, 0
  %vm45 = vcmask 1043456
  %v47 = vsel %vm45, %v31, 0
  %v50 = vsel %vm45, %v32, 0
  %v53 = vsel %vm45, %v33, 0
  %v56 = vsel %vm45, %v34, 0
  %58 = vmatprep.subr.mxu0 0.0
  %59 = vmatpush1.msra.mxu0 0.0
  %60 = vmatprep.subr.mxu0 0.0
  %61 = vmatpush1.msra.mxu0 0.0
  %62 = vmatprep.subr.mxu0 0.0
  %63 = vmatpush1.msra.mxu0 0.0
  %64 = vmatprep.subr.mxu0 0.0
  %65 = vmatpush1.msra.mxu0 0.0
  %66 = vmatprep.subr.mxu0 0.0
  %67 = vmatpush1.msra.mxu0 0.0
  %68 = vmatprep.subr.mxu0 0.0
  %69 = vmatpush1.msra.mxu0 0.0
  %70 = vmatprep.subr.mxu0 0.0
  %71 = vmatpush1.msra.mxu0 0.0
  %72 = vmatprep.subr.mxu0 0.0
  %73 = vmatpush1.msra.mxu0 0.0
  %74 = vmatprep.subr.mxu0 0.0
  %75 = vmatpush1.msra.mxu0 0.0
  %76 = vmatprep.subr.mxu0 0.0
  %77 = vmatpush1.msra.mxu0 0.0
  %78 = vmatprep.subr.mxu0 0.0
  %79 = vmatpush1.msra.mxu0 0.0
  %80 = vmatprep.subr.mxu0 %v50
  %81 = vmatpush1.msra.mxu0 %v47
  %82 = vmatprep.subr.mxu0 %v28
  %83 = vmatpush1.msra.mxu0 %v27
  %84 = vmatprep.subr.mxu0 %v24
  %85 = vmatpush1.msra.mxu0 %v23
  %86 = vmatprep.subr.mxu0 %v20
  %87 = vmatpush1.msra.mxu0 %v19
  %88 = vmatprep.subr.mxu0 %v16
  %89 = vmatpush1.msra.mxu0 %v15
  %90 = vmatprep.subr.mxu0 0.0
  %91 = vmatpush2.msra.mxu0 0.0
  %92 = vmatprep.subr.mxu0 0.0
  %93 = vmatpush2.msra.mxu0 0.0
  %94 = vmatprep.subr.mxu0 0.0
  %95 = vmatpush2.msra.mxu0 0.0
  %96 = vmatprep.subr.mxu0 0.0
  %97 = vmatpush2.msra.mxu0 0.0
  %98 = vmatprep.subr.mxu0 0.0
  %99 = vmatpush2.msra.mxu0 0.0
  %100 = vmatprep.subr.mxu0 0.0
  %101 = vmatpush2.msra.mxu0 0.0
  %102 = vmatprep.subr.mxu0 0.0
  %103 = vmatpush2.msra.mxu0 0.0
  %104 = vmatprep.subr.mxu0 0.0
  %105 = vmatpush2.msra.mxu0 0.0
  %106 = vmatprep.subr.mxu0 0.0
  %107 = vmatpush2.msra.mxu0 0.0
  %108 = vmatprep.subr.mxu0 0.0
  %109 = vmatpush2.msra.mxu0 0.0
  %110 = vmatprep.subr.mxu0 0.0
  %111 = vmatpush2.msra.mxu0 0.0
  %112 = vmatprep.subr.mxu0 0.0
  %113 = vmatpush2.msra.mxu0 0.0
  %114 = vmatprep.subr.mxu0 0.0
  %115 = vmatpush2.msra.mxu0 0.0
  %116 = vmatprep.subr.mxu0 0.0
  %117 = vmatpush2.msra.mxu0 0.0
  %118 = vmatprep.subr.mxu0 0.0
  %119 = vmatpush2.msra.mxu0 0.0
  %120 = vmatprep.subr.mxu0 0.0
  %121 = vmatpush2.msra.mxu0 0.0
  %122 = vmatprep.mubr.f32.mxu0 0.0
  %123 = vmatmul.mubr.f32.gmra.mxu0 %v43
  %v124 = vpop.f32.mrf.mxu0
  %v125 = vadd.f32 %v39, %v124
  %v126 = vpop.f32.mrf.mxu0
  %v127 = vadd.f32 %v39, %v126
  %128 = vdwg.mxu0
  %129 = vmatprep.subr.mxu0 0.0
  %130 = vmatpush1.msra.mxu0 0.0
  %131 = vmatprep.subr.mxu0 0.0
  %132 = vmatpush1.msra.mxu0 0.0
  %133 = vmatprep.subr.mxu0 0.0
  %134 = vmatpush1.msra.mxu0 0.0
  %135 = vmatprep.subr.mxu0 0.0
  %136 = vmatpush1.msra.mxu0 0.0
  %137 = vmatprep.subr.mxu0 0.0
  %138 = vmatpush1.msra.mxu0 0.0
  %139 = vmatprep.subr.mxu0 0.0
  %140 = vmatpush1.msra.mxu0 0.0
  %141 = vmatprep.subr.mxu0 0.0
  %142 = vmatpush1.msra.mxu0 0.0
  %143 = vmatprep.subr.mxu0 0.0
  %144 = vmatpush1.msra.mxu0 0.0
  %145 = vmatprep.subr.mxu0 0.0
  %146 = vmatpush1.msra.mxu0 0.0
  %147 = vmatprep.subr.mxu0 0.0
  %148 = vmatpush1.msra.mxu0 0.0
  %149 = vmatprep.subr.mxu0 0.0
  %150 = vmatpush1.msra.mxu0 0.0
  %151 = vmatprep.subr.mxu0 %v56
  %152 = vmatpush1.msra.mxu0 %v53
  %153 = vmatprep.subr.mxu0 %v30
  %154 = vmatpush1.msra.mxu0 %v29
  %155 = vmatprep.subr.mxu0 %v26
  %156 = vmatpush1.msra.mxu0 %v25
  %157 = vmatprep.subr.mxu0 %v22
  %158 = vmatpush1.msra.mxu0 %v21
  %159 = vmatprep.subr.mxu0 %v18
  %160 = vmatpush1.msra.mxu0 %v17
  %161 = vmatprep.subr.mxu0 0.0
  %162 = vmatpush2.msra.mxu0 0.0
  %163 = vmatprep.subr.mxu0 0.0
  %164 = vmatpush2.msra.mxu0 0.0
  %165 = vmatprep.subr.mxu0 0.0
  %166 = vmatpush2.msra.mxu0 0.0
  %167 = vmatprep.subr.mxu0 0.0
  %168 = vmatpush2.msra.mxu0 0.0
  %169 = vmatprep.subr.mxu0 0.0
  %170 = vmatpush2.msra.mxu0 0.0
  %171 = vmatprep.subr.mxu0 0.0
  %172 = vmatpush2.msra.mxu0 0.0
  %173 = vmatprep.subr.mxu0 0.0
  %174 = vmatpush2.msra.mxu0 0.0
  %175 = vmatprep.subr.mxu0 0.0
  %176 = vmatpush2.msra.mxu0 0.0
  %177 = vmatprep.subr.mxu0 0.0
  %178 = vmatpush2.msra.mxu0 0.0
  %179 = vmatprep.subr.mxu0 0.0
  %180 = vmatpush2.msra.mxu0 0.0
  %181 = vmatprep.subr.mxu0 0.0
  %182 = vmatpush2.msra.mxu0 0.0
  %183 = vmatprep.subr.mxu0 0.0
  %184 = vmatpush2.msra.mxu0 0.0
  %185 = vmatprep.subr.mxu0 0.0
  %186 = vmatpush2.msra.mxu0 0.0
  %187 = vmatprep.subr.mxu0 0.0
  %188 = vmatpush2.msra.mxu0 0.0
  %189 = vmatprep.subr.mxu0 0.0
  %190 = vmatpush2.msra.mxu0 0.0
  %191 = vmatprep.subr.mxu0 0.0
  %192 = vmatpush2.msra.mxu0 0.0
  %193 = vmatprep.mubr.f32.mxu0 0.0
  %194 = vmatmul.mubr.f32.gmra.mxu0 %v43
  %v195 = vpop.f32.mrf.mxu0
  %v196 = vadd.f32 %v39, %v195
  %v197 = vpop.f32.mrf.mxu0
  %v198 = vadd.f32 %v39, %v197
  %199 = vdwg.mxu0
  %v204 = vcombine.low %v125, %v127
  %v205 = vcombine.low %v196, %v198
  %208 = vst [vmem:[%s3] sm:$0x77] %v204
  %209 = vst [vmem:[%s3 + $0x8] sm:$0x77] %v205
  // Predicated region
  $region14: #{outconv_forward.1} parent=0 // pred_check
    _
  $region15: #{outconv_forward.1} parent=0 // pred_check_branch
    %211 = sbr.rel (0) target = $region17
  $region16: #{outconv_forward.1} parent=0 // pred_region
    _
  $region17: #{outconv_forward.1} parent=0 // pred_fallthru
    _
  // Predicated region
  $region18: #{outconv_forward.1} parent=0 // pred_check
    _
  $region19: #{outconv_forward.1} parent=0 // pred_check_branch
    %213 = sbr.rel (0) target = $region21
  $region20: #{outconv_forward.1} parent=0 // pred_region
    _
  $region21: #{outconv_forward.1} parent=0 // pred_fallthru
    _

</llo_original>
